<compile_context>
chip_gen: v6e
topology: v6e:2x2x1
jax: 0.10.0
libtpu: 0.0.40
codegen_flags: <defaults>
</compile_context>

<pallas_src>
import math

import jax
import jax.numpy as jnp
from jax import lax
from jax.experimental import pallas as pl
from jax.experimental.pallas import tpu as pltpu


def _round_up(x, m):
    return ((x + m - 1) // m) * m


def _fit_tile(requested, total, quantum):
    """Largest tile <= requested (multiple of quantum) that divides total."""
    t = max(quantum, min(requested, total))
    t = (t // quantum) * quantum
    while total % t:
        t -= quantum
    return t


def _pad2(a, rows, cols):
    pr, pc = rows - a.shape[0], cols - a.shape[1]
    if pr or pc:
        a = jnp.pad(a, ((0, pr), (0, pc)))
    return a


def _linearsp_kernel(x_ref, c_ref, xa_ref, b_ref, bias_ref, o_ref, acc_ref):
    # Grid: (i over batch tiles, j over out tiles, k over in tiles); k innermost.
    k = pl.program_id(2)

    @pl.when(k == 0)
    def _init():
        # Low-rank contribution (xa @ B.T) + bias, once per (i, j) tile.  The
        # xa / B block indices do not depend on k, so Pallas does not re-DMA
        # them across the k sweep.
        lowrank = lax.dot_general(
            xa_ref[...], b_ref[...],
            dimension_numbers=(((1,), (1,)), ((), ())),
            preferred_element_type=jnp.float32,
        )
        acc_ref[...] = lowrank + bias_ref[...].astype(jnp.float32)

    # Dense residual path: acc += x_tile @ C_tile.T  (C stays in (out, in) layout).
    acc_ref[...] += lax.dot_general(
        x_ref[...], c_ref[...],
        dimension_numbers=(((1,), (1,)), ((), ())),
        preferred_element_type=jnp.float32,
    )

    @pl.when(k == pl.num_programs(2) - 1)
    def _store():
        o_ref[...] = acc_ref[...].astype(o_ref.dtype)


def linearsp_forward(x, weightA, weightB, weightC, bias=None, *,
                     tm=512, tn=512, tk=512, compute_dtype=None):
    """x: (batch, in_features) -> (batch, out_features)."""
    batch, in_f = x.shape
    out_f, rank = weightB.shape

    out_dtype = x.dtype
    cdt = compute_dtype if compute_dtype is not None else x.dtype

    if bias is None:
        bias = jnp.zeros((out_f,), jnp.float32)

    # Lane/sublane-aligned extents; tn/tk divide N/K exactly (no dead weightC
    # columns streamed); M rounds up to tm (only x rows pad — cheap).
    N = _round_up(out_f, 128)
    K = _round_up(in_f, 128)
    M8 = _round_up(batch, 8)
    tm = min(tm, M8)
    tn = _fit_tile(tn, N, 128)
    tk = _fit_tile(tk, K, 128)
    M = _round_up(batch, tm)
    R = _round_up(rank, 128)  # lane-dense low-rank operands

    # Low-rank stage 1 hoisted out of the kernel: tiny GEMM, done once, full f32.
    xa = lax.dot_general(
        x.astype(jnp.float32), weightA.astype(jnp.float32),
        dimension_numbers=(((1,), (1,)), ((), ())),
        precision=lax.Precision.HIGHEST,
    )  # (batch, rank)

    # Zero padding only — no HBM transposes; weights keep their native layouts.
    x_p = _pad2(x, M, K).astype(cdt)                                   # (M, K)
    c_p = _pad2(weightC, N, K).astype(cdt)                             # (N, K)
    xa_p = _pad2(xa, M, R).astype(cdt)                                 # (M, R)
    b_p = _pad2(weightB, N, R).astype(cdt)                             # (N, R)
    bias_p = _pad2(bias.reshape(1, out_f).astype(jnp.float32), 1, N)   # (1, N)

    grid = (M // tm, N // tn, K // tk)

    # VMEM budget: double-buffered inputs + output + f32 accumulator, capped at
    # 48 MiB so it also fits v7x (64 MiB physical per TensorCore).
    isz = jnp.dtype(cdt).itemsize
    vmem_bytes = 2 * (tm * tk + tn * tk + tm * R + tn * R) * isz
    vmem_bytes += 2 * tn * 4                                  # bias row
    vmem_bytes += 2 * tm * tn * jnp.dtype(out_dtype).itemsize  # output
    vmem_bytes += tm * tn * 4                                  # f32 accumulator
    vmem_limit = int(min(max(2 * vmem_bytes, 32 * 1024 * 1024), 48 * 1024 * 1024))

    out_padded = pl.pallas_call(
        _linearsp_kernel,
        out_shape=jax.ShapeDtypeStruct((M, N), out_dtype),
        grid_spec=pltpu.PrefetchScalarGridSpec(
            num_scalar_prefetch=0,
            grid=grid,
            in_specs=[
                pl.BlockSpec((tm, tk), lambda i, j, k: (i, k)),  # x
                pl.BlockSpec((tn, tk), lambda i, j, k: (j, k)),  # weightC (out, in)
                pl.BlockSpec((tm, R), lambda i, j, k: (i, 0)),   # xa = x @ A.T
                pl.BlockSpec((tn, R), lambda i, j, k: (j, 0)),   # weightB (out, rank)
                pl.BlockSpec((1, tn), lambda i, j, k: (0, j)),   # bias row
            ],
            out_specs=pl.BlockSpec((tm, tn), lambda i, j, k: (i, j)),
            scratch_shapes=[
                pltpu.VMEM((tm, tn), jnp.float32),  # f32 output accumulator
            ],
        ),
        compiler_params=pltpu.CompilerParams(
            dimension_semantics=("parallel", "parallel", "arbitrary"),
            vmem_limit_bytes=vmem_limit,
        ),
    )(x_p, c_p, xa_p, b_p, bias_p)

    return out_padded[:batch, :out_f]


def make_params(key, in_features, out_features, rank, dtype=jnp.float32):
    """Deterministic init mirroring Linearsp.reset_parameters (uniform +/- stdv)."""
    kA, kB, kC, kb = jax.random.split(key, 4)
    stdvA = 1.0 / math.sqrt(in_features)
    stdvB = 1.0 / math.sqrt(rank)
    stdvC = 1.0 / math.sqrt(in_features)
    weightA = jax.random.uniform(kA, (rank, in_features), dtype, -stdvA, stdvA)
    weightB = jax.random.uniform(kB, (out_features, rank), dtype, -stdvB, stdvB)
    weightC = jax.random.uniform(kC, (out_features, in_features), dtype, -stdvC, stdvC)
    bias = jax.random.uniform(kb, (out_features,), dtype, -stdvA, stdvA)
    return weightA, weightB, weightC, bias


if __name__ == "__main__":
    key = jax.random.PRNGKey(0)
    in_features, out_features, rank, batch = 32, 16, 4, 8
    assert rank <= min(in_features, out_features)

    kx, kp = jax.random.split(key)
    x = jax.random.normal(kx, (batch, in_features), jnp.float32)
    weightA, weightB, weightC, bias = make_params(kp, in_features, out_features, rank)

    fwd = jax.jit(linearsp_forward)
    y = fwd(x, weightA, weightB, weightC, bias)
    jax.block_until_ready(y)

    # Pure-JAX reference (original, non-reassociated formulation), high precision.
    w_ref = jnp.dot(weightB, weightA, precision=lax.Precision.HIGHEST) + weightC
    y_ref = jnp.dot(x, w_ref.T, precision=lax.Precision.HIGHEST) + bias
    assert y.shape == (batch, out_features)
    assert jnp.allclose(y, y_ref, atol=2e-5, rtol=2e-5)

    print("KERNEL_OK")
</pallas_src>

<mosaic_0001>
module attributes {stable_mosaic.version = 11 : i64} {
  func.func @_linearsp_kernel(%arg0: i32, %arg1: i32, %arg2: i32, %arg3: memref<8x128xf32, #tpu.memory_space<vmem>>, %arg4: memref<128x128xf32, #tpu.memory_space<vmem>>, %arg5: memref<8x128xf32, #tpu.memory_space<vmem>>, %arg6: memref<128x128xf32, #tpu.memory_space<vmem>>, %arg7: memref<1x128xf32, #tpu.memory_space<vmem>>, %arg8: memref<8x128xf32, #tpu.memory_space<vmem>>, %arg9: memref<8x128xf32, #tpu.memory_space<vmem>>) attributes {dimension_semantics = [#tpu.dimension_semantics<parallel>, #tpu.dimension_semantics<parallel>, #tpu.dimension_semantics<arbitrary>], iteration_bounds = array<i64: 1, 1, 1>, scalar_prefetch = 0 : i64, scratch_operands = 1 : i64, tpu.core_type = #tpu.core_type<tc>, window_params = [{transform_indices = @transform_0, window_bounds = array<i64: 8, 128>}, {transform_indices = @transform_1, window_bounds = array<i64: 128, 128>}, {transform_indices = @transform_2, window_bounds = array<i64: 8, 128>}, {transform_indices = @transform_3, window_bounds = array<i64: 128, 128>}, {transform_indices = @transform_4, window_bounds = array<i64: 1, 128>}, {transform_indices = @transform_5, window_bounds = array<i64: 8, 128>}]} {
    %c0_i32 = arith.constant 0 : i32
    %0 = arith.cmpi eq, %arg2, %c0_i32 : i32
    %1 = arith.extui %0 : i1 to i32
    %c0_i32_0 = arith.constant 0 : i32
    %2 = arith.cmpi ne, %1, %c0_i32_0 : i32
    scf.if %2 {
      %c0_10 = arith.constant 0 : index
      %c0_11 = arith.constant 0 : index
      %12 = vector.load %arg5[%c0_10, %c0_11] : memref<8x128xf32, #tpu.memory_space<vmem>>, vector<8x128xf32>
      %c0_12 = arith.constant 0 : index
      %c0_13 = arith.constant 0 : index
      %13 = vector.load %arg6[%c0_12, %c0_13] : memref<128x128xf32, #tpu.memory_space<vmem>>, vector<128x128xf32>
      %cst_14 = arith.constant dense<0.000000e+00> : vector<8x128xf32>
      %14 = tpu.matmul %12, %13, %cst_14 {dimension_numbers = #tpu.dot_dimension_numbers<[1], [1], [0], [0], [0, 0, 1, 0], [], []>} : vector<8x128xf32>, vector<128x128xf32>, vector<8x128xf32> -> vector<8x128xf32>
      %c0_15 = arith.constant 0 : index
      %c0_16 = arith.constant 0 : index
      %15 = vector.load %arg7[%c0_15, %c0_16] : memref<1x128xf32, #tpu.memory_space<vmem>>, vector<1x128xf32>
      %16 = vector.broadcast %15 : vector<1x128xf32> to vector<8x128xf32>
      %17 = arith.addf %14, %16 : vector<8x128xf32>
      %c0_17 = arith.constant 0 : index
      %c0_18 = arith.constant 0 : index
      %18 = vector.load %arg9[%c0_17, %c0_18] : memref<8x128xf32, #tpu.memory_space<vmem>>, vector<8x128xf32>
      tpu.vector_store %arg9[%c0_17, %c0_18], %17 {strides = array<i32>} : memref<8x128xf32, #tpu.memory_space<vmem>>, vector<8x128xf32>,
    } else {
    }
    %c0 = arith.constant 0 : index
    %c0_1 = arith.constant 0 : index
    %3 = vector.load %arg9[%c0, %c0_1] : memref<8x128xf32, #tpu.memory_space<vmem>>, vector<8x128xf32>
    %c0_2 = arith.constant 0 : index
    %c0_3 = arith.constant 0 : index
    %4 = vector.load %arg3[%c0_2, %c0_3] : memref<8x128xf32, #tpu.memory_space<vmem>>, vector<8x128xf32>
    %c0_4 = arith.constant 0 : index
    %c0_5 = arith.constant 0 : index
    %5 = vector.load %arg4[%c0_4, %c0_5] : memref<128x128xf32, #tpu.memory_space<vmem>>, vector<128x128xf32>
    %cst = arith.constant dense<0.000000e+00> : vector<8x128xf32>
    %6 = tpu.matmul %4, %5, %cst {dimension_numbers = #tpu.dot_dimension_numbers<[1], [1], [0], [0], [0, 0, 1, 0], [], []>} : vector<8x128xf32>, vector<128x128xf32>, vector<8x128xf32> -> vector<8x128xf32>
    %7 = arith.addf %3, %6 : vector<8x128xf32>
    %c0_6 = arith.constant 0 : index
    %c0_7 = arith.constant 0 : index
    %8 = vector.load %arg9[%c0_6, %c0_7] : memref<8x128xf32, #tpu.memory_space<vmem>>, vector<8x128xf32>
    tpu.vector_store %arg9[%c0_6, %c0_7], %7 {strides = array<i32>} : memref<8x128xf32, #tpu.memory_space<vmem>>, vector<8x128xf32>,
    %c0_i32_8 = arith.constant 0 : i32
    %9 = arith.cmpi eq, %arg2, %c0_i32_8 : i32
    %10 = arith.extui %9 : i1 to i32
    %c0_i32_9 = arith.constant 0 : i32
    %11 = arith.cmpi ne, %10, %c0_i32_9 : i32
    scf.if %11 {
      %c0_10 = arith.constant 0 : index
      %c0_11 = arith.constant 0 : index
      %12 = vector.load %arg9[%c0_10, %c0_11] : memref<8x128xf32, #tpu.memory_space<vmem>>, vector<8x128xf32>
      %c0_12 = arith.constant 0 : index
      %c0_13 = arith.constant 0 : index
      %13 = vector.load %arg8[%c0_12, %c0_13] : memref<8x128xf32, #tpu.memory_space<vmem>>, vector<8x128xf32>
      tpu.vector_store %arg8[%c0_12, %c0_13], %12 {strides = array<i32>} : memref<8x128xf32, #tpu.memory_space<vmem>>, vector<8x128xf32>,
    } else {
    }
    return
  }
  func.func @transform_0(%arg0: i32, %arg1: i32, %arg2: i32) -> (i32, i32) {
    %c0_i32 = arith.constant 0 : i32
    return %arg0, %arg2 : i32, i32
  }
  func.func @transform_1(%arg0: i32, %arg1: i32, %arg2: i32) -> (i32, i32) {
    %c0_i32 = arith.constant 0 : i32
    return %arg1, %arg2 : i32, i32
  }
  func.func @transform_2(%arg0: i32, %arg1: i32, %arg2: i32) -> (i32, i32) {
    %c0_i32 = arith.constant 0 : i32
    %c0_i32_0 = arith.constant 0 : i32
    return %arg0, %c0_i32 : i32, i32
  }
  func.func @transform_3(%arg0: i32, %arg1: i32, %arg2: i32) -> (i32, i32) {
    %c0_i32 = arith.constant 0 : i32
    %c0_i32_0 = arith.constant 0 : i32
    return %arg1, %c0_i32 : i32, i32
  }
  func.func @transform_4(%arg0: i32, %arg1: i32, %arg2: i32) -> (i32, i32) {
    %c0_i32 = arith.constant 0 : i32
    %c0_i32_0 = arith.constant 0 : i32
    return %c0_i32, %arg1 : i32, i32
  }
  func.func @transform_5(%arg0: i32, %arg1: i32, %arg2: i32) -> (i32, i32) {
    %c0_i32 = arith.constant 0 : i32
    return %arg0, %arg1 : i32, i32
  }
}

</mosaic_0001>

<llo_original>
// kernel: linearsp_forward.1
$region0: #{linearsp_forward.1}
  #allocation0 [shape = 'u32[]', space=smem, size = 0x4, offset = 0x4, fixed_abs, tag = 'smem constant byte address 0x4 - core index']
  #allocation1 [shape = 'u32[144,128]{1,0:T(1,128)}', space=vmem, size = 0x12000, scoped, tag = 'internal scratch']
  #allocation2 [shape = 'f32[8,128]{1,0:T(8,128)}', space=vmem, size = 0x1000, scoped, tag = 'scratch operand']
  %s0 = inlined_call_operand.vmem [shape: f32[8,128], index: 0, kind: input, shape index: {}]
  %s1 = inlined_call_operand.vmem [shape: f32[128,128], index: 1, kind: input, shape index: {}]
  %s2 = inlined_call_operand.vmem [shape: f32[8,128], index: 2, kind: input, shape index: {}]
  %s3 = inlined_call_operand.vmem [shape: f32[128,128], index: 3, kind: input, shape index: {}]
  %s4 = inlined_call_operand.vmem [shape: f32[1,128], index: 4, kind: input, shape index: {}]
  %s5 = inlined_call_operand.hbm [shape: f32[8,128], index: 5, kind: output, shape index: {}]
  %s6 = sld [smem:[#allocation0]]
  $region38: #{linearsp_forward.1} parent=0
    _
  %s8 = ssub.s32 1, %s6
  %s9 = scalar_select 0, %s8, %s6
  $region1: #{linearsp_forward.1} parent=0
    #allocation3 [shape = 'u8[4096]{0}', space=vmem, size = 0x1000, scoped, tag = 'output window, operand 0, single buffered']
    #allocation4 [shape = 's32[1]{0}', space=sflag, size = 0x4, scoped, tag = 'scoped memory for linearsp_forward.1']
    %10 = vsyncpa [#allocation4], 0
    // Predicated region
    $region2: #{linearsp_forward.1} parent=1 // pred_check
      _
    $region3: #{linearsp_forward.1} parent=1 // pred_check_branch
      %12 = sbr.rel (0) target = $region5
    $region4: #{linearsp_forward.1} parent=1 // pred_region
      _
    $region5: #{linearsp_forward.1} parent=1 // pred_fallthru
      _
    // Predicated region
    $region6: #{linearsp_forward.1} parent=1 // pred_check
      _
    $region7: #{linearsp_forward.1} parent=1 // pred_check_branch
      %14 = sbr.rel (0) target = $region9
    $region8: #{linearsp_forward.1} parent=1 // pred_region
      _
    $region9: #{linearsp_forward.1} parent=1 // pred_fallthru
      _
    // Predicated region
    $region10: #{linearsp_forward.1} parent=1 // pred_check
      _
    $region11: #{linearsp_forward.1} parent=1 // pred_check_branch
      %16 = sbr.rel (0) target = $region13
    $region12: #{linearsp_forward.1} parent=1 // pred_region
      _
    $region13: #{linearsp_forward.1} parent=1 // pred_fallthru
      _
    // Predicated region
    $region14: #{linearsp_forward.1} parent=1 // pred_check
      _
    $region15: #{linearsp_forward.1} parent=1 // pred_check_branch
      %18 = sbr.rel (0) target = $region17
    $region16: #{linearsp_forward.1} parent=1 // pred_region
      _
    $region17: #{linearsp_forward.1} parent=1 // pred_fallthru
      _
    // Predicated region
    $region18: #{linearsp_forward.1} parent=1 // pred_check
      _
    $region19: #{linearsp_forward.1} parent=1 // pred_check_branch
      %20 = sbr.rel (0) target = $region21
    $region20: #{linearsp_forward.1} parent=1 // pred_region
      _
    $region21: #{linearsp_forward.1} parent=1 // pred_fallthru
      _
    %p21 = scmp.eq.s32.totalorder 0, 0
    // Predicated region
    $region22: #{linearsp_forward.1} parent=1 // pred_check
      %p22 = pneg %p21
    $region23: #{linearsp_forward.1} parent=1 // pred_check_branch
      %24 = sbr.rel (%p22) target = $region25
    $region24: #{linearsp_forward.1} parent=1 // pred_region
      %v25 = vld [vmem:[%s2] sm:$0xff]
      %v26 = vld [vmem:[%s3] sm:$0xff]
      %v27 = vld [vmem:[%s3 + $0x8] sm:$0xff]
      %v28 = vld [vmem:[%s3 + $0x10] sm:$0xff]
      %v29 = vld [vmem:[%s3 + $0x18] sm:$0xff]
      %v30 = vld [vmem:[%s3 + $0x20] sm:$0xff]
      %v31 = vld [vmem:[%s3 + $0x28] sm:$0xff]
      %v32 = vld [vmem:[%s3 + $0x30] sm:$0xff]
      %v33 = vld [vmem:[%s3 + $0x38] sm:$0xff]
      %v34 = vld [vmem:[%s3 + $0x40] sm:$0xff]
      %v35 = vld [vmem:[%s3 + $0x48] sm:$0xff]
      %v36 = vld [vmem:[%s3 + $0x50] sm:$0xff]
      %v37 = vld [vmem:[%s3 + $0x58] sm:$0xff]
      %v38 = vld [vmem:[%s3 + $0x60] sm:$0xff]
      %v39 = vld [vmem:[%s3 + $0x68] sm:$0xff]
      %v40 = vld [vmem:[%s3 + $0x70] sm:$0xff]
      %v41 = vld [vmem:[%s3 + $0x78] sm:$0xff]
      %v42 = vld [vmem:[%s4] sm:$0x1]
      %v44 = vlaneseq
      %v45 = vshrl.u32 %v44, 7
      %v46 = vsub.s32 0, %v45
      %v47 = vrot.slane %v42, %v46
      %49 = vmatprep.subr.mxu0 0.0
      %50 = vmatpush1.xpose.msra.mxu0 %v41
      %51 = vmatprep.subr.mxu0 0.0
      %52 = vmatpush1.xpose.msra.mxu0 %v40
      %53 = vmatprep.subr.mxu0 0.0
      %54 = vmatpush1.xpose.msra.mxu0 %v39
      %55 = vmatprep.subr.mxu0 0.0
      %56 = vmatpush1.xpose.msra.mxu0 %v38
      %57 = vmatprep.subr.mxu0 0.0
      %58 = vmatpush1.xpose.msra.mxu0 %v37
      %59 = vmatprep.subr.mxu0 0.0
      %60 = vmatpush1.xpose.msra.mxu0 %v36
      %61 = vmatprep.subr.mxu0 0.0
      %62 = vmatpush1.xpose.msra.mxu0 %v35
      %63 = vmatprep.subr.mxu0 0.0
      %64 = vmatpush1.xpose.msra.mxu0 %v34
      %65 = vmatprep.subr.mxu0 0.0
      %66 = vmatpush1.xpose.msra.mxu0 %v33
      %67 = vmatprep.subr.mxu0 0.0
      %68 = vmatpush1.xpose.msra.mxu0 %v32
      %69 = vmatprep.subr.mxu0 0.0
      %70 = vmatpush1.xpose.msra.mxu0 %v31
      %71 = vmatprep.subr.mxu0 0.0
      %72 = vmatpush1.xpose.msra.mxu0 %v30
      %73 = vmatprep.subr.mxu0 0.0
      %74 = vmatpush1.xpose.msra.mxu0 %v29
      %75 = vmatprep.subr.mxu0 0.0
      %76 = vmatpush1.xpose.msra.mxu0 %v28
      %77 = vmatprep.subr.mxu0 0.0
      %78 = vmatpush1.xpose.msra.mxu0 %v27
      %79 = vmatprep.subr.mxu0 0.0
      %80 = vmatpush1.xpose.msra.mxu0 %v26
      %81 = vmatprep.subr.mxu0 0.0
      %82 = vmatpush2.xpose.msra.mxu0 0.0
      %83 = vmatprep.subr.mxu0 0.0
      %84 = vmatpush2.xpose.msra.mxu0 0.0
      %85 = vmatprep.subr.mxu0 0.0
      %86 = vmatpush2.xpose.msra.mxu0 0.0
      %87 = vmatprep.subr.mxu0 0.0
      %88 = vmatpush2.xpose.msra.mxu0 0.0
      %89 = vmatprep.subr.mxu0 0.0
      %90 = vmatpush2.xpose.msra.mxu0 0.0
      %91 = vmatprep.subr.mxu0 0.0
      %92 = vmatpush2.xpose.msra.mxu0 0.0
      %93 = vmatprep.subr.mxu0 0.0
      %94 = vmatpush2.xpose.msra.mxu0 0.0
      %95 = vmatprep.subr.mxu0 0.0
      %96 = vmatpush2.xpose.msra.mxu0 0.0
      %97 = vmatprep.subr.mxu0 0.0
      %98 = vmatpush2.xpose.msra.mxu0 0.0
      %99 = vmatprep.subr.mxu0 0.0
      %100 = vmatpush2.xpose.msra.mxu0 0.0
      %101 = vmatprep.subr.mxu0 0.0
      %102 = vmatpush2.xpose.msra.mxu0 0.0
      %103 = vmatprep.subr.mxu0 0.0
      %104 = vmatpush2.xpose.msra.mxu0 0.0
      %105 = vmatprep.subr.mxu0 0.0
      %106 = vmatpush2.xpose.msra.mxu0 0.0
      %107 = vmatprep.subr.mxu0 0.0
      %108 = vmatpush2.xpose.msra.mxu0 0.0
      %109 = vmatprep.subr.mxu0 0.0
      %110 = vmatpush2.xpose.msra.mxu0 0.0
      %111 = vmatprep.subr.mxu0 0.0
      %112 = vmatpush2.xpose.msra.mxu0 0.0
      %113 = vmatprep.mubr.f32.mxu0 0.0
      %114 = vmatmul.mubr.f32.gmra.mxu0 %v25
      %v115 = vpop.f32.mrf.mxu0
      %v116 = vadd.f32 %v47, %v115
      %v117 = vpop.f32.mrf.mxu0
      %118 = vdwg.mxu0
      %119 = vst [vmem:[#allocation2] sm:$0xff] %v116
    $region25: #{linearsp_forward.1} parent=1 // pred_fallthru
      _
    %v120 = vld [vmem:[#allocation2] sm:$0xff]
    %v121 = vld [vmem:[%s0] sm:$0xff]
    %v122 = vld [vmem:[%s1] sm:$0xff]
    %v123 = vld [vmem:[%s1 + $0x8] sm:$0xff]
    %v124 = vld [vmem:[%s1 + $0x10] sm:$0xff]
    %v125 = vld [vmem:[%s1 + $0x18] sm:$0xff]
    %v126 = vld [vmem:[%s1 + $0x20] sm:$0xff]
    %v127 = vld [vmem:[%s1 + $0x28] sm:$0xff]
    %v128 = vld [vmem:[%s1 + $0x30] sm:$0xff]
    %v129 = vld [vmem:[%s1 + $0x38] sm:$0xff]
    %v130 = vld [vmem:[%s1 + $0x40] sm:$0xff]
    %v131 = vld [vmem:[%s1 + $0x48] sm:$0xff]
    %v132 = vld [vmem:[%s1 + $0x50] sm:$0xff]
    %v133 = vld [vmem:[%s1 + $0x58] sm:$0xff]
    %v134 = vld [vmem:[%s1 + $0x60] sm:$0xff]
    %v135 = vld [vmem:[%s1 + $0x68] sm:$0xff]
    %v136 = vld [vmem:[%s1 + $0x70] sm:$0xff]
    %v137 = vld [vmem:[%s1 + $0x78] sm:$0xff]
    %138 = vmatprep.subr.mxu0 0.0
    %139 = vmatpush1.xpose.msra.mxu0 %v137
    %140 = vmatprep.subr.mxu0 0.0
    %141 = vmatpush1.xpose.msra.mxu0 %v136
    %142 = vmatprep.subr.mxu0 0.0
    %143 = vmatpush1.xpose.msra.mxu0 %v135
    %144 = vmatprep.subr.mxu0 0.0
    %145 = vmatpush1.xpose.msra.mxu0 %v134
    %146 = vmatprep.subr.mxu0 0.0
    %147 = vmatpush1.xpose.msra.mxu0 %v133
    %148 = vmatprep.subr.mxu0 0.0
    %149 = vmatpush1.xpose.msra.mxu0 %v132
    %150 = vmatprep.subr.mxu0 0.0
    %151 = vmatpush1.xpose.msra.mxu0 %v131
    %152 = vmatprep.subr.mxu0 0.0
    %153 = vmatpush1.xpose.msra.mxu0 %v130
    %154 = vmatprep.subr.mxu0 0.0
    %155 = vmatpush1.xpose.msra.mxu0 %v129
    %156 = vmatprep.subr.mxu0 0.0
    %157 = vmatpush1.xpose.msra.mxu0 %v128
    %158 = vmatprep.subr.mxu0 0.0
    %159 = vmatpush1.xpose.msra.mxu0 %v127
    %160 = vmatprep.subr.mxu0 0.0
    %161 = vmatpush1.xpose.msra.mxu0 %v126
    %162 = vmatprep.subr.mxu0 0.0
    %163 = vmatpush1.xpose.msra.mxu0 %v125
    %164 = vmatprep.subr.mxu0 0.0
    %165 = vmatpush1.xpose.msra.mxu0 %v124
    %166 = vmatprep.subr.mxu0 0.0
    %167 = vmatpush1.xpose.msra.mxu0 %v123
    %168 = vmatprep.subr.mxu0 0.0
    %169 = vmatpush1.xpose.msra.mxu0 %v122
    %170 = vmatprep.subr.mxu0 0.0
    %171 = vmatpush2.xpose.msra.mxu0 0.0
    %172 = vmatprep.subr.mxu0 0.0
    %173 = vmatpush2.xpose.msra.mxu0 0.0
    %174 = vmatprep.subr.mxu0 0.0
    %175 = vmatpush2.xpose.msra.mxu0 0.0
    %176 = vmatprep.subr.mxu0 0.0
    %177 = vmatpush2.xpose.msra.mxu0 0.0
    %178 = vmatprep.subr.mxu0 0.0
    %179 = vmatpush2.xpose.msra.mxu0 0.0
    %180 = vmatprep.subr.mxu0 0.0
    %181 = vmatpush2.xpose.msra.mxu0 0.0
    %182 = vmatprep.subr.mxu0 0.0
    %183 = vmatpush2.xpose.msra.mxu0 0.0
    %184 = vmatprep.subr.mxu0 0.0
    %185 = vmatpush2.xpose.msra.mxu0 0.0
    %186 = vmatprep.subr.mxu0 0.0
    %187 = vmatpush2.xpose.msra.mxu0 0.0
    %188 = vmatprep.subr.mxu0 0.0
    %189 = vmatpush2.xpose.msra.mxu0 0.0
    %190 = vmatprep.subr.mxu0 0.0
    %191 = vmatpush2.xpose.msra.mxu0 0.0
    %192 = vmatprep.subr.mxu0 0.0
    %193 = vmatpush2.xpose.msra.mxu0 0.0
    %194 = vmatprep.subr.mxu0 0.0
    %195 = vmatpush2.xpose.msra.mxu0 0.0
    %196 = vmatprep.subr.mxu0 0.0
    %197 = vmatpush2.xpose.msra.mxu0 0.0
    %198 = vmatprep.subr.mxu0 0.0
    %199 = vmatpush2.xpose.msra.mxu0 0.0
    %200 = vmatprep.subr.mxu0 0.0
    %201 = vmatpush2.xpose.msra.mxu0 0.0
    %202 = vmatprep.mubr.f32.mxu0 0.0
    %203 = vmatmul.mubr.f32.gmra.mxu0 %v121
    %v204 = vpop.f32.mrf.mxu0
    %v205 = vadd.f32 0.0, %v204
    %v206 = vpop.f32.mrf.mxu0
    %207 = vdwg.mxu0
    %v208 = vadd.f32 %v120, %v205
    %209 = vst [vmem:[#allocation2] sm:$0xff] %v208
    // Predicated region
    $region26: #{linearsp_forward.1} parent=1 // pred_check
      %p210 = pneg %p21
    $region27: #{linearsp_forward.1} parent=1 // pred_check_branch
      %212 = sbr.rel (%p210) target = $region29
    $region28: #{linearsp_forward.1} parent=1 // pred_region
      %v213 = vld [vmem:[#allocation2] sm:$0xff]
      %214 = vst [vmem:[#allocation3] sm:$0xff] %v213
    $region29: #{linearsp_forward.1} parent=1 // pred_fallthru
      _
    // Predicated region
    $region30: #{linearsp_forward.1} parent=1 // pred_check
      _
    $region31: #{linearsp_forward.1} parent=1 // pred_check_branch
      %216 = sbr.rel (0) target = $region33
    $region32: #{linearsp_forward.1} parent=1 // pred_region
      %s218 = ssub.s32 128, 128
      %219 = vsyncadd [#allocation4], %s218
      %s221 = sshll.u32 [#allocation3], 4
      %s222 = int_to_ptr.vmem [resolvable:$true] %s221
      %224 = dma.vmem_to_hbm [thread:$0]  %s222, 128, %s5, [#allocation4]
    $region33: #{linearsp_forward.1} parent=1 // pred_fallthru
      _
    // Predicated region
    $region34: #{linearsp_forward.1} parent=1 // pred_check
      _
    $region35: #{linearsp_forward.1} parent=1 // pred_check_branch
      %226 = sbr.rel (0) target = $region37
    $region36: #{linearsp_forward.1} parent=1 // pred_region
      %227 = dma.done [#allocation4], 128
    $region37: #{linearsp_forward.1} parent=1 // pred_fallthru
      _
    %228 = vsyncpa [#allocation4], 1

</llo_original>
